<compile_context>
chip_gen: v6e
topology: v6e:2x2x1
jax: 0.10.0
libtpu: 0.0.40
codegen_flags: <defaults>
</compile_context>

<pallas_src>
import functools

import jax
import jax.numpy as jnp
from jax.experimental import pallas as pl
from jax.experimental.pallas import tpu as pltpu

EPS = 1e-5
_ROW_TILE_CAP = 2048      # rows (N*H*W) per grid step for the flattened 1x1 / BN kernels

_PARALLEL = pltpu.CompilerParams(dimension_semantics=("parallel",))
_ARBITRARY = pltpu.CompilerParams(dimension_semantics=("arbitrary",))


def _pick_tile(m, cap=_ROW_TILE_CAP):
    """Largest divisor of m that is <= cap, preferring multiples of 8 (sublane)."""
    if m <= cap:
        return m
    for t in range(cap, 0, -1):
        if m % t == 0 and t % 8 == 0:
            return t
    for t in range(cap, 0, -1):
        if m % t == 0:
            return t
    return m


def _row_spec(tm, c):
    return pl.BlockSpec((tm, c), lambda i: (i, 0))


def _bcast_spec(c):
    return pl.BlockSpec((1, c), lambda i: (0, 0))


# ---------------------------------------------------------------------------
# BatchNorm statistics kernel (single pass: sum + sum of squares)
# ---------------------------------------------------------------------------
def _bn_stats_kernel(x_ref, gamma_ref, beta_ref, scale_ref, shift_ref,
                     sum_ref, sq_ref, *, count):
    @pl.when(pl.program_id(0) == 0)
    def _():
        sum_ref[...] = jnp.zeros_like(sum_ref)
        sq_ref[...] = jnp.zeros_like(sq_ref)

    x = x_ref[...]
    sum_ref[...] += jnp.sum(x, axis=0, keepdims=True)
    sq_ref[...] += jnp.sum(x * x, axis=0, keepdims=True)

    @pl.when(pl.program_id(0) == pl.num_programs(0) - 1)
    def _():
        inv = 1.0 / count
        mean = sum_ref[...] * inv
        var = sq_ref[...] * inv - mean * mean          # biased (training-mode) variance
        scale = gamma_ref[...] * jax.lax.rsqrt(var + EPS)
        scale_ref[...] = scale
        shift_ref[...] = beta_ref[...] - mean * scale


def bn_stats(x, gamma, beta):
    c = x.shape[-1]
    x2 = x.reshape(-1, c)
    m = x2.shape[0]
    tm = _pick_tile(m)
    return pl.pallas_call(
        functools.partial(_bn_stats_kernel, count=float(m)),
        out_shape=(jax.ShapeDtypeStruct((1, c), jnp.float32),
                   jax.ShapeDtypeStruct((1, c), jnp.float32)),
        grid=(m // tm,),
        in_specs=[_row_spec(tm, c), _bcast_spec(c), _bcast_spec(c)],
        out_specs=(_bcast_spec(c), _bcast_spec(c)),
        scratch_shapes=[pltpu.VMEM((1, c), jnp.float32),
                        pltpu.VMEM((1, c), jnp.float32)],
        compiler_params=_ARBITRARY,
    )(x2, gamma.reshape(1, c).astype(jnp.float32), beta.reshape(1, c).astype(jnp.float32))


# ---------------------------------------------------------------------------
# Fused (BN + ReLU) -> 1x1 conv kernels (pure GEMMs over flattened N*H*W rows)
# ---------------------------------------------------------------------------
def _bnrelu_mm_kernel(x_ref, scale_ref, shift_ref, w_ref, o_ref):
    y = jnp.maximum(x_ref[...] * scale_ref[...] + shift_ref[...], 0.0)
    o_ref[...] = jnp.dot(y, w_ref[...], preferred_element_type=jnp.float32)


def _bnrelu_mm_dual_kernel(x_ref, scale_ref, shift_ref, w_ref, wsc_ref, bsc_ref,
                           o_ref, sc_ref):
    # bn1+relu is computed once and feeds both conv2 and the 1x1 shortcut conv.
    y = jnp.maximum(x_ref[...] * scale_ref[...] + shift_ref[...], 0.0)
    o_ref[...] = jnp.dot(y, w_ref[...], preferred_element_type=jnp.float32)
    sc_ref[...] = jnp.dot(y, wsc_ref[...], preferred_element_type=jnp.float32) + bsc_ref[...]


def _bnrelu_mm_residual_kernel(x_ref, scale_ref, shift_ref, w_ref, b_ref,
                               res_ref, rscale_ref, rshift_ref, o_ref, *, bn_on_res):
    y = jnp.maximum(x_ref[...] * scale_ref[...] + shift_ref[...], 0.0)
    out = jnp.dot(y, w_ref[...], preferred_element_type=jnp.float32) + b_ref[...]
    res = res_ref[...]
    if bn_on_res:     # identity shortcut: residual = relu(bn1(x)), recomputed on the fly
        res = jnp.maximum(res * rscale_ref[...] + rshift_ref[...], 0.0)
    o_ref[...] = out + res


def bnrelu_conv1x1(x, scale, shift, w):
    n, h, wd, cin = x.shape
    cout = w.shape[-1]
    m = n * h * wd
    tm = _pick_tile(m)
    out = pl.pallas_call(
        _bnrelu_mm_kernel,
        out_shape=jax.ShapeDtypeStruct((m, cout), jnp.float32),
        grid=(m // tm,),
        in_specs=[_row_spec(tm, cin), _bcast_spec(cin), _bcast_spec(cin),
                  pl.BlockSpec((cin, cout), lambda i: (0, 0))],
        out_specs=_row_spec(tm, cout),
        compiler_params=_PARALLEL,
    )(x.reshape(m, cin), scale, shift, w.reshape(cin, cout))
    return out.reshape(n, h, wd, cout)


def bnrelu_conv1x1_dual(x, scale, shift, w, w_sc, b_sc):
    n, h, wd, cin = x.shape
    cout = w.shape[-1]
    csc = w_sc.shape[-1]
    m = n * h * wd
    tm = _pick_tile(m)
    out, sc = pl.pallas_call(
        _bnrelu_mm_dual_kernel,
        out_shape=(jax.ShapeDtypeStruct((m, cout), jnp.float32),
                   jax.ShapeDtypeStruct((m, csc), jnp.float32)),
        grid=(m // tm,),
        in_specs=[_row_spec(tm, cin), _bcast_spec(cin), _bcast_spec(cin),
                  pl.BlockSpec((cin, cout), lambda i: (0, 0)),
                  pl.BlockSpec((cin, csc), lambda i: (0, 0)),
                  _bcast_spec(csc)],
        out_specs=(_row_spec(tm, cout), _row_spec(tm, csc)),
        compiler_params=_PARALLEL,
    )(x.reshape(m, cin), scale, shift, w.reshape(cin, cout),
      w_sc.reshape(cin, csc), b_sc.reshape(1, csc))
    return out.reshape(n, h, wd, cout), sc.reshape(n, h, wd, csc)


def bnrelu_conv1x1_residual(x, scale, shift, w, bias, res, res_bn):
    n, h, wd, cin = x.shape
    cout = w.shape[-1]
    m = n * h * wd
    tm = _pick_tile(m)
    bn_on_res = res_bn is not None
    if bn_on_res:
        rscale, rshift = res_bn
    else:
        rscale = jnp.ones((1, cout), jnp.float32)
        rshift = jnp.zeros((1, cout), jnp.float32)
    out = pl.pallas_call(
        functools.partial(_bnrelu_mm_residual_kernel, bn_on_res=bn_on_res),
        out_shape=jax.ShapeDtypeStruct((m, cout), jnp.float32),
        grid=(m // tm,),
        in_specs=[_row_spec(tm, cin), _bcast_spec(cin), _bcast_spec(cin),
                  pl.BlockSpec((cin, cout), lambda i: (0, 0)), _bcast_spec(cout),
                  _row_spec(tm, cout), _bcast_spec(cout), _bcast_spec(cout)],
        out_specs=_row_spec(tm, cout),
        compiler_params=_PARALLEL,
    )(x.reshape(m, cin), scale, shift, w.reshape(cin, cout), bias.reshape(1, cout),
      res.reshape(m, cout), rscale, rshift)
    return out.reshape(n, h, wd, cout)


# ---------------------------------------------------------------------------
# Fused (BN + ReLU) -> 3x3 conv (stride s, padding 1), gridded over batch
# ---------------------------------------------------------------------------
def _bnrelu_conv3x3_kernel(x_ref, scale_ref, shift_ref, w_ref, o_ref,
                           ypad_ref, acc_ref, *, stride):
    _, hi, wi, cin = x_ref.shape
    _, ho, wo, cout = o_ref.shape
    # BN (folded scale/shift) + ReLU prologue for this image.
    y = jnp.maximum(x_ref[0] * scale_ref[...] + shift_ref[...], 0.0)
    # Zero padding is applied *after* BN+ReLU, in-kernel (no jnp.pad HBM round trip):
    # zero the halo scratch, then store the interior.  (Re-zeroed every step so the
    # kernel stays safe under megacore "parallel" partitioning.)
    ypad_ref[...] = jnp.zeros_like(ypad_ref)
    ypad_ref[1:hi + 1, 1:wi + 1, :] = y
    # 3x3 tap loop accumulates into a VMEM scratch; the strided output is computed
    # directly via strided windows, so no oversized stride-1 output is produced.
    acc_ref[...] = jnp.zeros_like(acc_ref)
    for kh in range(3):
        rows = pl.ds(kh, ho) if stride == 1 else pl.ds(kh, ho, stride)
        for kw in range(3):
            cols = pl.ds(kw, wo) if stride == 1 else pl.ds(kw, wo, stride)
            patch = ypad_ref[rows, cols, :].reshape(ho * wo, cin)
            acc_ref[...] += jnp.dot(patch, w_ref[kh * 3 + kw],
                                    preferred_element_type=jnp.float32)
    o_ref[...] = acc_ref[...].reshape(1, ho, wo, cout)


def bnrelu_conv3x3(x, scale, shift, w, *, stride):
    # TODO(synk): for very large spatial extents, tile over output rows with a manual
    # halo DMA instead of one image per grid step.
    n, h, wd, cin = x.shape
    cout = w.shape[-1]
    ho = (h - 1) // stride + 1          # padding = (3 - 1) // 2 = 1
    wo = (wd - 1) // stride + 1
    return pl.pallas_call(
        functools.partial(_bnrelu_conv3x3_kernel, stride=stride),
        out_shape=jax.ShapeDtypeStruct((n, ho, wo, cout), jnp.float32),
        grid=(n,),
        in_specs=[pl.BlockSpec((1, h, wd, cin), lambda i: (i, 0, 0, 0)),
                  _bcast_spec(cin), _bcast_spec(cin),
                  pl.BlockSpec((9, cin, cout), lambda i: (0, 0, 0))],
        out_specs=pl.BlockSpec((1, ho, wo, cout), lambda i: (i, 0, 0, 0)),
        scratch_shapes=[pltpu.VMEM((h + 2, wd + 2, cin), jnp.float32),
                        pltpu.VMEM((ho * wo, cout), jnp.float32)],
        compiler_params=_PARALLEL,
    )(x, scale, shift, w.reshape(9, cin, cout))


# ---------------------------------------------------------------------------
# ResNetV2Block / Stack forward (bottleneck, dilation=1)
# ---------------------------------------------------------------------------
def resnetv2_block(x, p, *, stride=1, conv_shortcut=False):
    """Pre-activation bottleneck block; x is NHWC float32."""
    scale1, shift1 = bn_stats(x, p["preact_gamma"], p["preact_beta"])
    if conv_shortcut:
        h1, shortcut = bnrelu_conv1x1_dual(x, scale1, shift1, p["w2"], p["sc_w"], p["sc_b"])
        if stride > 1:   # 1x1 stride-s conv == stride-1 conv subsampled (not hit in Stack)
            shortcut = shortcut[:, ::stride, ::stride, :]
        res, res_bn = shortcut, None
    else:
        h1 = bnrelu_conv1x1(x, scale1, shift1, p["w2"])
        # Identity / MaxPool(k=1, stride) shortcut == (subsampled) relu(bn1(x)); the
        # bn1+relu is re-applied to the residual inside the final fused kernel, so the
        # pre-activation tensor is never written to HBM.
        res = x[:, ::stride, ::stride, :] if stride > 1 else x
        res_bn = (scale1, shift1)
    scale2, shift2 = bn_stats(h1, p["g2"], p["b2"])
    h2 = bnrelu_conv3x3(h1, scale2, shift2, p["w3"], stride=stride)
    scale3, shift3 = bn_stats(h2, p["g3"], p["b3"])
    return bnrelu_conv1x1_residual(h2, scale3, shift3, p["w4"], p["b4"], res, res_bn)


def stack_forward(x_nchw, params, *, stride=2):
    x = jnp.transpose(x_nchw, (0, 2, 3, 1)).astype(jnp.float32)   # NCHW -> NHWC
    x = resnetv2_block(x, params["block_1"], stride=1,
                       conv_shortcut=params["first_shortcut"])
    for bp in params["middle"]:
        x = resnetv2_block(x, bp, stride=1, conv_shortcut=False)
    x = resnetv2_block(x, params["final"], stride=stride, conv_shortcut=False)
    return jnp.transpose(x, (0, 3, 1, 2))                          # back to NCHW


# ---------------------------------------------------------------------------
# Deterministic parameter init (synthetic; shapes follow the nn.Module __init__)
# ---------------------------------------------------------------------------
def init_block_params(key, cin, cout, conv_shortcut):
    ks = jax.random.split(key, 12)
    w = lambda k, s: 0.1 * jax.random.normal(k, s, jnp.float32)
    p = {
        "preact_gamma": 1.0 + 0.1 * jax.random.normal(ks[0], (cin,), jnp.float32),
        "preact_beta": 0.1 * jax.random.normal(ks[1], (cin,), jnp.float32),
        "w2": w(ks[4], (1, 1, cin, cout)),          # conv2 (1x1, bottleneck), bias=False
        "g2": 1.0 + 0.1 * jax.random.normal(ks[5], (cout,), jnp.float32),
        "b2": 0.1 * jax.random.normal(ks[6], (cout,), jnp.float32),
        "w3": w(ks[7], (3, 3, cout, cout)),         # conv3 (3x3), bias=False
        "g3": 1.0 + 0.1 * jax.random.normal(ks[8], (cout,), jnp.float32),
        "b3": 0.1 * jax.random.normal(ks[9], (cout,), jnp.float32),
        "w4": w(ks[10], (1, 1, cout, 4 * cout)),    # conv4 (1x1) with bias
        "b4": w(ks[11], (4 * cout,)),
    }
    if conv_shortcut:
        p["sc_w"] = w(ks[2], (1, 1, cin, 4 * cout))
        p["sc_b"] = w(ks[3], (4 * cout,))
    return p


def init_stack_params(key, in_filters, out_filters, blocks, first_shortcut=True):
    keys = jax.random.split(key, blocks)
    return {
        "first_shortcut": first_shortcut,
        "block_1": init_block_params(keys[0], in_filters, out_filters, first_shortcut),
        "middle": [init_block_params(keys[i - 1], 4 * out_filters, out_filters, False)
                   for i in range(2, blocks)],
        "final": init_block_params(keys[blocks - 1], 4 * out_filters, out_filters, False),
    }


# ---------------------------------------------------------------------------
# Pure-JAX reference (for a correctness check against the Pallas kernels)
# ---------------------------------------------------------------------------
def _bn_relu_ref(x, gamma, beta):
    mean = jnp.mean(x, axis=(0, 1, 2), keepdims=True)
    var = jnp.mean((x - mean) ** 2, axis=(0, 1, 2), keepdims=True)
    return jnp.maximum((x - mean) * jax.lax.rsqrt(var + EPS) * gamma + beta, 0.0)


def _conv_ref(x, w, b, stride, padding):
    y = jax.lax.conv_general_dilated(
        x, w, window_strides=(stride, stride),
        padding=[(padding, padding), (padding, padding)],
        dimension_numbers=("NHWC", "HWIO", "NHWC"))
    return y + b


def _block_ref(x, p, stride, conv_shortcut):
    pre = _bn_relu_ref(x, p["preact_gamma"], p["preact_beta"])
    if conv_shortcut:
        shortcut = _conv_ref(pre, p["sc_w"], p["sc_b"], stride, 0)
    elif stride > 1:
        shortcut = pre[:, ::stride, ::stride, :]
    else:
        shortcut = pre
    cout = p["w2"].shape[-1]
    z = jnp.zeros((cout,), jnp.float32)
    h = _conv_ref(pre, p["w2"], z, 1, 0)
    h = _bn_relu_ref(h, p["g2"], p["b2"])
    h = _conv_ref(h, p["w3"], z, stride, 1)
    h = _bn_relu_ref(h, p["g3"], p["b3"])
    h = _conv_ref(h, p["w4"], p["b4"], 1, 0)
    return h + shortcut


def _stack_ref(x_nchw, params, stride=2):
    x = jnp.transpose(x_nchw, (0, 2, 3, 1)).astype(jnp.float32)
    x = _block_ref(x, params["block_1"], 1, params["first_shortcut"])
    for bp in params["middle"]:
        x = _block_ref(x, bp, 1, False)
    x = _block_ref(x, params["final"], stride, False)
    return jnp.transpose(x, (0, 3, 1, 2))


if __name__ == "__main__":
    key = jax.random.PRNGKey(0)
    k_x, k_p = jax.random.split(key)
    # Stack(in_filters=4, out_filters=4, blocks=3, stride=2,
    #       block_type='bottleneck', first_shortcut=True)
    x = jax.random.normal(k_x, (2, 4, 16, 16), jnp.float32)   # NCHW, like PyTorch
    params = init_stack_params(k_p, in_filters=4, out_filters=4, blocks=3,
                               first_shortcut=True)

    out = jax.block_until_ready(stack_forward(x, params, stride=2))
    ref = jax.block_until_ready(_stack_ref(x, params, stride=2))

    assert out.shape == (2, 16, 8, 8), out.shape
    err = float(jnp.max(jnp.abs(out - ref)))
    assert jnp.allclose(out, ref, atol=1e-3, rtol=1e-3), err
    print("KERNEL_OK")
</pallas_src>

<mosaic_0001>
module attributes {stable_mosaic.version = 11 : i64} {
  func.func @_bn_stats_kernel(%arg0: i32, %arg1: memref<512x4xf32, #tpu.memory_space<vmem>>, %arg2: memref<1x4xf32, #tpu.memory_space<vmem>>, %arg3: memref<1x4xf32, #tpu.memory_space<vmem>>, %arg4: memref<1x4xf32, #tpu.memory_space<vmem>>, %arg5: memref<1x4xf32, #tpu.memory_space<vmem>>, %arg6: memref<1x4xf32, #tpu.memory_space<vmem>>, %arg7: memref<1x4xf32, #tpu.memory_space<vmem>>) attributes {dimension_semantics = [#tpu.dimension_semantics<arbitrary>], iteration_bounds = array<i64: 1>, scalar_prefetch = 0 : i64, scratch_operands = 2 : i64, tpu.core_type = #tpu.core_type<tc>, window_params = [{transform_indices = @transform_0, window_bounds = array<i64: 512, 4>}, {pipeline_mode = #tpu.pipeline_mode<synchronous>, transform_indices = @transform_1, window_bounds = array<i64: 1, 4>}, {pipeline_mode = #tpu.pipeline_mode<synchronous>, transform_indices = @transform_2, window_bounds = array<i64: 1, 4>}, {pipeline_mode = #tpu.pipeline_mode<synchronous>, transform_indices = @transform_3, window_bounds = array<i64: 1, 4>}, {pipeline_mode = #tpu.pipeline_mode<synchronous>, transform_indices = @transform_4, window_bounds = array<i64: 1, 4>}]} {
    %c0_i32 = arith.constant 0 : i32
    %0 = arith.cmpi eq, %arg0, %c0_i32 : i32
    %1 = arith.extui %0 : i1 to i32
    %c0_i32_0 = arith.constant 0 : i32
    %2 = arith.cmpi ne, %1, %c0_i32_0 : i32
    scf.if %2 {
      %cst_13 = arith.constant 0.000000e+00 : f32
      %18 = vector.broadcast %cst_13 : f32 to vector<1x4xf32>
      %c0_14 = arith.constant 0 : index
      %c0_15 = arith.constant 0 : index
      %19 = vector.load %arg6[%c0_14, %c0_15] : memref<1x4xf32, #tpu.memory_space<vmem>>, vector<1x4xf32>
      tpu.vector_store %arg6[%c0_14, %c0_15], %18 {strides = array<i32>} : memref<1x4xf32, #tpu.memory_space<vmem>>, vector<1x4xf32>,
      %cst_16 = arith.constant 0.000000e+00 : f32
      %20 = vector.broadcast %cst_16 : f32 to vector<1x4xf32>
      %c0_17 = arith.constant 0 : index
      %c0_18 = arith.constant 0 : index
      %21 = vector.load %arg7[%c0_17, %c0_18] : memref<1x4xf32, #tpu.memory_space<vmem>>, vector<1x4xf32>
      tpu.vector_store %arg7[%c0_17, %c0_18], %20 {strides = array<i32>} : memref<1x4xf32, #tpu.memory_space<vmem>>, vector<1x4xf32>,
    } else {
    }
    %c0 = arith.constant 0 : index
    %c0_1 = arith.constant 0 : index
    %3 = vector.load %arg1[%c0, %c0_1] : memref<512x4xf32, #tpu.memory_space<vmem>>, vector<512x4xf32>
    %c0_2 = arith.constant 0 : index
    %c0_3 = arith.constant 0 : index
    %4 = vector.load %arg6[%c0_2, %c0_3] : memref<1x4xf32, #tpu.memory_space<vmem>>, vector<1x4xf32>
    %cst = arith.constant dense<0.000000e+00> : vector<4xf32>
    %5 = vector.multi_reduction <add>, %3, %cst [0] : vector<512x4xf32> to vector<4xf32>
    %6 = vector.shape_cast %5 : vector<4xf32> to vector<1x4xf32>
    %7 = arith.addf %4, %6 : vector<1x4xf32>
    %c0_4 = arith.constant 0 : index
    %c0_5 = arith.constant 0 : index
    %8 = vector.load %arg6[%c0_4, %c0_5] : memref<1x4xf32, #tpu.memory_space<vmem>>, vector<1x4xf32>
    tpu.vector_store %arg6[%c0_4, %c0_5], %7 {strides = array<i32>} : memref<1x4xf32, #tpu.memory_space<vmem>>, vector<1x4xf32>,
    %c0_6 = arith.constant 0 : index
    %c0_7 = arith.constant 0 : index
    %9 = vector.load %arg7[%c0_6, %c0_7] : memref<1x4xf32, #tpu.memory_space<vmem>>, vector<1x4xf32>
    %10 = arith.mulf %3, %3 : vector<512x4xf32>
    %cst_8 = arith.constant dense<0.000000e+00> : vector<4xf32>
    %11 = vector.multi_reduction <add>, %10, %cst_8 [0] : vector<512x4xf32> to vector<4xf32>
    %12 = vector.shape_cast %11 : vector<4xf32> to vector<1x4xf32>
    %13 = arith.addf %9, %12 : vector<1x4xf32>
    %c0_9 = arith.constant 0 : index
    %c0_10 = arith.constant 0 : index
    %14 = vector.load %arg7[%c0_9, %c0_10] : memref<1x4xf32, #tpu.memory_space<vmem>>, vector<1x4xf32>
    tpu.vector_store %arg7[%c0_9, %c0_10], %13 {strides = array<i32>} : memref<1x4xf32, #tpu.memory_space<vmem>>, vector<1x4xf32>,
    %c0_i32_11 = arith.constant 0 : i32
    %15 = arith.cmpi eq, %arg0, %c0_i32_11 : i32
    %16 = arith.extui %15 : i1 to i32
    %c0_i32_12 = arith.constant 0 : i32
    %17 = arith.cmpi ne, %16, %c0_i32_12 : i32
    scf.if %17 {
      %c0_13 = arith.constant 0 : index
      %c0_14 = arith.constant 0 : index
      %18 = vector.load %arg6[%c0_13, %c0_14] : memref<1x4xf32, #tpu.memory_space<vmem>>, vector<1x4xf32>
      %cst_15 = arith.constant 0.001953125 : f32
      %19 = vector.broadcast %cst_15 : f32 to vector<1x4xf32>
      %20 = arith.mulf %18, %19 : vector<1x4xf32>
      %c0_16 = arith.constant 0 : index
      %c0_17 = arith.constant 0 : index
      %21 = vector.load %arg7[%c0_16, %c0_17] : memref<1x4xf32, #tpu.memory_space<vmem>>, vector<1x4xf32>
      %cst_18 = arith.constant 0.001953125 : f32
      %22 = vector.broadcast %cst_18 : f32 to vector<1x4xf32>
      %23 = arith.mulf %21, %22 : vector<1x4xf32>
      %24 = arith.mulf %20, %20 : vector<1x4xf32>
      %25 = arith.subf %23, %24 : vector<1x4xf32>
      %c0_19 = arith.constant 0 : index
      %c0_20 = arith.constant 0 : index
      %26 = vector.load %arg2[%c0_19, %c0_20] : memref<1x4xf32, #tpu.memory_space<vmem>>, vector<1x4xf32>
      %cst_21 = arith.constant 9.99999974E-6 : f32
      %27 = vector.broadcast %cst_21 : f32 to vector<1x4xf32>
      %28 = arith.addf %25, %27 : vector<1x4xf32>
      %29 = math.rsqrt %28 : vector<1x4xf32>
      %30 = arith.mulf %26, %29 : vector<1x4xf32>
      %c0_22 = arith.constant 0 : index
      %c0_23 = arith.constant 0 : index
      %31 = vector.load %arg4[%c0_22, %c0_23] : memref<1x4xf32, #tpu.memory_space<vmem>>, vector<1x4xf32>
      tpu.vector_store %arg4[%c0_22, %c0_23], %30 {strides = array<i32>} : memref<1x4xf32, #tpu.memory_space<vmem>>, vector<1x4xf32>,
      %c0_24 = arith.constant 0 : index
      %c0_25 = arith.constant 0 : index
      %32 = vector.load %arg3[%c0_24, %c0_25] : memref<1x4xf32, #tpu.memory_space<vmem>>, vector<1x4xf32>
      %33 = arith.mulf %20, %30 : vector<1x4xf32>
      %34 = arith.subf %32, %33 : vector<1x4xf32>
      %c0_26 = arith.constant 0 : index
      %c0_27 = arith.constant 0 : index
      %35 = vector.load %arg5[%c0_26, %c0_27] : memref<1x4xf32, #tpu.memory_space<vmem>>, vector<1x4xf32>
      tpu.vector_store %arg5[%c0_26, %c0_27], %34 {strides = array<i32>} : memref<1x4xf32, #tpu.memory_space<vmem>>, vector<1x4xf32>,
    } else {
    }
    return
  }
  func.func @transform_0(%arg0: i32) -> (i32, i32) {
    %c0_i32 = arith.constant 0 : i32
    %c0_i32_0 = arith.constant 0 : i32
    return %arg0, %c0_i32 : i32, i32
  }
  func.func @transform_1(%arg0: i32) -> (i32, i32) {
    %c0_i32 = arith.constant 0 : i32
    %c0_i32_0 = arith.constant 0 : i32
    %c0_i32_1 = arith.constant 0 : i32
    return %c0_i32, %c0_i32_0 : i32, i32
  }
  func.func @transform_2(%arg0: i32) -> (i32, i32) {
    %c0_i32 = arith.constant 0 : i32
    %c0_i32_0 = arith.constant 0 : i32
    %c0_i32_1 = arith.constant 0 : i32
    return %c0_i32, %c0_i32_0 : i32, i32
  }
  func.func @transform_3(%arg0: i32) -> (i32, i32) {
    %c0_i32 = arith.constant 0 : i32
    %c0_i32_0 = arith.constant 0 : i32
    %c0_i32_1 = arith.constant 0 : i32
    return %c0_i32, %c0_i32_0 : i32, i32
  }
  func.func @transform_4(%arg0: i32) -> (i32, i32) {
    %c0_i32 = arith.constant 0 : i32
    %c0_i32_0 = arith.constant 0 : i32
    %c0_i32_1 = arith.constant 0 : i32
    return %c0_i32, %c0_i32_0 : i32, i32
  }
}

</mosaic_0001>

<llo_original>
// kernel: tpu_custom_call.1
$region0: #{tpu_custom_call.1}
  #allocation0 [shape = 'u32[]', space=smem, size = 0x4, offset = 0x4, fixed_abs, tag = 'smem constant byte address 0x4 - core index']
  #allocation1 [shape = 'u32[144,128]{1,0:T(1,128)}', space=vmem, size = 0x12000, scoped, tag = 'internal scratch']
  #allocation2 [shape = 'f32[1,4]{1,0:T(1,128)}', space=vmem, size = 0x200, scoped, tag = 'scratch operand']
  #allocation3 [shape = 'f32[1,4]{1,0:T(1,128)}', space=vmem, size = 0x200, scoped, tag = 'scratch operand']
  %s0 = inlined_call_operand.vmem [shape: f32[512,4], index: 0, kind: input, shape index: {}]
  %s1 = inlined_call_operand.vmem [shape: f32[1,4], index: 1, kind: input, shape index: {}]
  %s2 = inlined_call_operand.vmem [shape: f32[1,4], index: 2, kind: input, shape index: {}]
  %s3 = inlined_call_operand.hbm [shape: f32[1,4], index: 3, kind: output, shape index: {0}]
  %s4 = inlined_call_operand.hbm [shape: f32[1,4], index: 4, kind: output, shape index: {1}]
  %5 = xla_tuple %s3, %s4
  %s6 = sld [smem:[#allocation0]]
  $region38: #{tpu_custom_call.1} parent=0
    _
  %s8 = ssub.s32 1, %s6
  %s9 = scalar_select 0, %s8, %s6
  $region1: #{tpu_custom_call.1} parent=0
    #allocation4 [shape = 'u8[512]{0}', space=vmem, size = 0x400, scoped, tag = 'output window, operand 0, single buffered']
    #allocation5 [shape = 's32[1]{0}', space=sflag, size = 0x4, scoped, tag = 'scoped memory for tpu_custom_call.1']
    #allocation6 [shape = 'u8[512]{0}', space=vmem, size = 0x400, scoped, tag = 'output window, operand 1, single buffered']
    #allocation7 [shape = 's32[1]{0}', space=sflag, size = 0x4, scoped, tag = 'scoped memory for tpu_custom_call.1']
    %10 = vsyncpa [#allocation5], 0
    %11 = vsyncpa [#allocation7], 0
    // Predicated region
    $region2: #{tpu_custom_call.1} parent=1 // pred_check
      _
    $region3: #{tpu_custom_call.1} parent=1 // pred_check_branch
      %13 = sbr.rel (0) target = $region5
    $region4: #{tpu_custom_call.1} parent=1 // pred_region
      _
    $region5: #{tpu_custom_call.1} parent=1 // pred_fallthru
      _
    // Predicated region
    $region6: #{tpu_custom_call.1} parent=1 // pred_check
      _
    $region7: #{tpu_custom_call.1} parent=1 // pred_check_branch
      %15 = sbr.rel (0) target = $region9
    $region8: #{tpu_custom_call.1} parent=1 // pred_region
      _
    $region9: #{tpu_custom_call.1} parent=1 // pred_fallthru
      _
    // Predicated region
    $region10: #{tpu_custom_call.1} parent=1 // pred_check
      _
    $region11: #{tpu_custom_call.1} parent=1 // pred_check_branch
      %17 = sbr.rel (0) target = $region13
    $region12: #{tpu_custom_call.1} parent=1 // pred_region
      _
    $region13: #{tpu_custom_call.1} parent=1 // pred_fallthru
      _
    %p18 = scmp.eq.s32.totalorder 0, 0
    // Predicated region
    $region14: #{tpu_custom_call.1} parent=1 // pred_check
      %p19 = pneg %p18
    $region15: #{tpu_custom_call.1} parent=1 // pred_check_branch
      %21 = sbr.rel (%p19) target = $region17
    $region16: #{tpu_custom_call.1} parent=1 // pred_region
      %vm22 = vcmask 24576
      %23 = vst.msk [vmem:[#allocation2] sm:$0x1] %vm22, 0.0
      %24 = vst.msk [vmem:[#allocation3] sm:$0x1] %vm22, 0.0
    $region17: #{tpu_custom_call.1} parent=1 // pred_fallthru
      _
    %v25 = vld [vmem:[%s0] sm:$0xff]
    %v26 = vld [vmem:[%s0 + $0x8] sm:$0xff]
    %v27 = vld [vmem:[%s0 + $0x10] sm:$0xff]
    %v28 = vld [vmem:[%s0 + $0x18] sm:$0xff]
    %v29 = vld [vmem:[%s0 + $0x20] sm:$0xff]
    %v30 = vld [vmem:[%s0 + $0x28] sm:$0xff]
    %v31 = vld [vmem:[%s0 + $0x30] sm:$0xff]
    %v32 = vld [vmem:[%s0 + $0x38] sm:$0xff]
    %v33 = vld [vmem:[%s0 + $0x40] sm:$0xff]
    %v34 = vld [vmem:[%s0 + $0x48] sm:$0xff]
    %v35 = vld [vmem:[%s0 + $0x50] sm:$0xff]
    %v36 = vld [vmem:[%s0 + $0x58] sm:$0xff]
    %v37 = vld [vmem:[%s0 + $0x60] sm:$0xff]
    %v38 = vld [vmem:[%s0 + $0x68] sm:$0xff]
    %v39 = vld [vmem:[%s0 + $0x70] sm:$0xff]
    %v40 = vld [vmem:[%s0 + $0x78] sm:$0xff]
    %v41 = vld [vmem:[%s0 + $0x80] sm:$0xff]
    %v42 = vld [vmem:[%s0 + $0x88] sm:$0xff]
    %v43 = vld [vmem:[%s0 + $0x90] sm:$0xff]
    %v44 = vld [vmem:[%s0 + $0x98] sm:$0xff]
    %v45 = vld [vmem:[%s0 + $0xa0] sm:$0xff]
    %v46 = vld [vmem:[%s0 + $0xa8] sm:$0xff]
    %v47 = vld [vmem:[%s0 + $0xb0] sm:$0xff]
    %v48 = vld [vmem:[%s0 + $0xb8] sm:$0xff]
    %v49 = vld [vmem:[%s0 + $0xc0] sm:$0xff]
    %v50 = vld [vmem:[%s0 + $0xc8] sm:$0xff]
    %v51 = vld [vmem:[%s0 + $0xd0] sm:$0xff]
    %v52 = vld [vmem:[%s0 + $0xd8] sm:$0xff]
    %v53 = vld [vmem:[%s0 + $0xe0] sm:$0xff]
    %v54 = vld [vmem:[%s0 + $0xe8] sm:$0xff]
    %v55 = vld [vmem:[%s0 + $0xf0] sm:$0xff]
    %v56 = vld [vmem:[%s0 + $0xf8] sm:$0xff]
    %v57 = vld [vmem:[%s0 + $0x100] sm:$0xff]
    %v58 = vld [vmem:[%s0 + $0x108] sm:$0xff]
    %v59 = vld [vmem:[%s0 + $0x110] sm:$0xff]
    %v60 = vld [vmem:[%s0 + $0x118] sm:$0xff]
    %v61 = vld [vmem:[%s0 + $0x120] sm:$0xff]
    %v62 = vld [vmem:[%s0 + $0x128] sm:$0xff]
    %v63 = vld [vmem:[%s0 + $0x130] sm:$0xff]
    %v64 = vld [vmem:[%s0 + $0x138] sm:$0xff]
    %v65 = vld [vmem:[%s0 + $0x140] sm:$0xff]
    %v66 = vld [vmem:[%s0 + $0x148] sm:$0xff]
    %v67 = vld [vmem:[%s0 + $0x150] sm:$0xff]
    %v68 = vld [vmem:[%s0 + $0x158] sm:$0xff]
    %v69 = vld [vmem:[%s0 + $0x160] sm:$0xff]
    %v70 = vld [vmem:[%s0 + $0x168] sm:$0xff]
    %v71 = vld [vmem:[%s0 + $0x170] sm:$0xff]
    %v72 = vld [vmem:[%s0 + $0x178] sm:$0xff]
    %v73 = vld [vmem:[%s0 + $0x180] sm:$0xff]
    %v74 = vld [vmem:[%s0 + $0x188] sm:$0xff]
    %v75 = vld [vmem:[%s0 + $0x190] sm:$0xff]
    %v76 = vld [vmem:[%s0 + $0x198] sm:$0xff]
    %v77 = vld [vmem:[%s0 + $0x1a0] sm:$0xff]
    %v78 = vld [vmem:[%s0 + $0x1a8] sm:$0xff]
    %v79 = vld [vmem:[%s0 + $0x1b0] sm:$0xff]
    %v80 = vld [vmem:[%s0 + $0x1b8] sm:$0xff]
    %v81 = vld [vmem:[%s0 + $0x1c0] sm:$0xff]
    %v82 = vld [vmem:[%s0 + $0x1c8] sm:$0xff]
    %v83 = vld [vmem:[%s0 + $0x1d0] sm:$0xff]
    %v84 = vld [vmem:[%s0 + $0x1d8] sm:$0xff]
    %v85 = vld [vmem:[%s0 + $0x1e0] sm:$0xff]
    %v86 = vld [vmem:[%s0 + $0x1e8] sm:$0xff]
    %v87 = vld [vmem:[%s0 + $0x1f0] sm:$0xff]
    %v88 = vld [vmem:[%s0 + $0x1f8] sm:$0xff]
    %v89 = vld [vmem:[#allocation2] sm:$0x1]
    %vm90 = vcmask 31744
    %v91 = vsel %vm90, %v25, 0.0
    %v92 = vsel %vm90, %v26, 0.0
    %v93 = vadd.f32 %v91, %v92
    %v94 = vsel %vm90, %v27, 0.0
    %v95 = vadd.f32 %v93, %v94
    %v96 = vsel %vm90, %v28, 0.0
    %v97 = vadd.f32 %v95, %v96
    %v98 = vsel %vm90, %v29, 0.0
    %v99 = vadd.f32 %v97, %v98
    %v100 = vsel %vm90, %v30, 0.0
    %v101 = vadd.f32 %v99, %v100
    %v102 = vsel %vm90, %v31, 0.0
    %v103 = vadd.f32 %v101, %v102
    %v104 = vsel %vm90, %v32, 0.0
    %v105 = vadd.f32 %v103, %v104
    %v106 = vsel %vm90, %v33, 0.0
    %v107 = vadd.f32 %v105, %v106
    %v108 = vsel %vm90, %v34, 0.0
    %v109 = vadd.f32 %v107, %v108
    %v110 = vsel %vm90, %v35, 0.0
    %v111 = vadd.f32 %v109, %v110
    %v112 = vsel %vm90, %v36, 0.0
    %v113 = vadd.f32 %v111, %v112
    %v114 = vsel %vm90, %v37, 0.0
    %v115 = vadd.f32 %v113, %v114
    %v116 = vsel %vm90, %v38, 0.0
    %v117 = vadd.f32 %v115, %v116
    %v118 = vsel %vm90, %v39, 0.0
    %v119 = vadd.f32 %v117, %v118
    %v120 = vsel %vm90, %v40, 0.0
    %v121 = vadd.f32 %v119, %v120
    %v122 = vsel %vm90, %v41, 0.0
    %v123 = vadd.f32 %v121, %v122
    %v124 = vsel %vm90, %v42, 0.0
    %v125 = vadd.f32 %v123, %v124
    %v126 = vsel %vm90, %v43, 0.0
    %v127 = vadd.f32 %v125, %v126
    %v128 = vsel %vm90, %v44, 0.0
    %v129 = vadd.f32 %v127, %v128
    %v130 = vsel %vm90, %v45, 0.0
    %v131 = vadd.f32 %v129, %v130
    %v132 = vsel %vm90, %v46, 0.0
    %v133 = vadd.f32 %v131, %v132
    %v134 = vsel %vm90, %v47, 0.0
    %v135 = vadd.f32 %v133, %v134
    %v136 = vsel %vm90, %v48, 0.0
    %v137 = vadd.f32 %v135, %v136
    %v138 = vsel %vm90, %v49, 0.0
    %v139 = vadd.f32 %v137, %v138
    %v140 = vsel %vm90, %v50, 0.0
    %v141 = vadd.f32 %v139, %v140
    %v142 = vsel %vm90, %v51, 0.0
    %v143 = vadd.f32 %v141, %v142
    %v144 = vsel %vm90, %v52, 0.0
    %v145 = vadd.f32 %v143, %v144
    %v146 = vsel %vm90, %v53, 0.0
    %v147 = vadd.f32 %v145, %v146
    %v148 = vsel %vm90, %v54, 0.0
    %v149 = vadd.f32 %v147, %v148
    %v150 = vsel %vm90, %v55, 0.0
    %v151 = vadd.f32 %v149, %v150
    %v152 = vsel %vm90, %v56, 0.0
    %v153 = vadd.f32 %v151, %v152
    %v154 = vsel %vm90, %v57, 0.0
    %v155 = vadd.f32 %v153, %v154
    %v156 = vsel %vm90, %v58, 0.0
    %v157 = vadd.f32 %v155, %v156
    %v158 = vsel %vm90, %v59, 0.0
    %v159 = vadd.f32 %v157, %v158
    %v160 = vsel %vm90, %v60, 0.0
    %v161 = vadd.f32 %v159, %v160
    %v162 = vsel %vm90, %v61, 0.0
    %v163 = vadd.f32 %v161, %v162
    %v164 = vsel %vm90, %v62, 0.0
    %v165 = vadd.f32 %v163, %v164
    %v166 = vsel %vm90, %v63, 0.0
    %v167 = vadd.f32 %v165, %v166
    %v168 = vsel %vm90, %v64, 0.0
    %v169 = vadd.f32 %v167, %v168
    %v170 = vsel %vm90, %v65, 0.0
    %v171 = vadd.f32 %v169, %v170
    %v172 = vsel %vm90, %v66, 0.0
    %v173 = vadd.f32 %v171, %v172
    %v174 = vsel %vm90, %v67, 0.0
    %v175 = vadd.f32 %v173, %v174
    %v176 = vsel %vm90, %v68, 0.0
    %v177 = vadd.f32 %v175, %v176
    %v178 = vsel %vm90, %v69, 0.0
    %v179 = vadd.f32 %v177, %v178
    %v180 = vsel %vm90, %v70, 0.0
    %v181 = vadd.f32 %v179, %v180
    %v182 = vsel %vm90, %v71, 0.0
    %v183 = vadd.f32 %v181, %v182
    %v184 = vsel %vm90, %v72, 0.0
    %v185 = vadd.f32 %v183, %v184
    %v186 = vsel %vm90, %v73, 0.0
    %v187 = vadd.f32 %v185, %v186
    %v188 = vsel %vm90, %v74, 0.0
    %v189 = vadd.f32 %v187, %v188
    %v190 = vsel %vm90, %v75, 0.0
    %v191 = vadd.f32 %v189, %v190
    %v192 = vsel %vm90, %v76, 0.0
    %v193 = vadd.f32 %v191, %v192
    %v194 = vsel %vm90, %v77, 0.0
    %v195 = vadd.f32 %v193, %v194
    %v196 = vsel %vm90, %v78, 0.0
    %v197 = vadd.f32 %v195, %v196
    %v198 = vsel %vm90, %v79, 0.0
    %v199 = vadd.f32 %v197, %v198
    %v200 = vsel %vm90, %v80, 0.0
    %v201 = vadd.f32 %v199, %v200
    %v202 = vsel %vm90, %v81, 0.0
    %v203 = vadd.f32 %v201, %v202
    %v204 = vsel %vm90, %v82, 0.0
    %v205 = vadd.f32 %v203, %v204
    %v206 = vsel %vm90, %v83, 0.0
    %v207 = vadd.f32 %v205, %v206
    %v208 = vsel %vm90, %v84, 0.0
    %v209 = vadd.f32 %v207, %v208
    %v210 = vsel %vm90, %v85, 0.0
    %v211 = vadd.f32 %v209, %v210
    %v212 = vsel %vm90, %v86, 0.0
    %v213 = vadd.f32 %v211, %v212
    %v214 = vsel %vm90, %v87, 0.0
    %v215 = vadd.f32 %v213, %v214
    %v216 = vsel %vm90, %v88, 0.0
    %v217 = vadd.f32 %v215, %v216
    %v218 = vrot.slane %v217, 4
    %v219 = vadd.f32 %v217, %v218
    %v220 = vrot.slane %v219, 2
    %v221 = vadd.f32 %v219, %v220
    %v222 = vrot.slane %v221, 1
    %v223 = vadd.f32 %v221, %v222
    %v224 = vadd.f32 %v89, %v223
    %vm225 = vcmask 24576
    %226 = vst.msk [vmem:[#allocation2] sm:$0x1] %vm225, %v224
    %v227 = vld [vmem:[#allocation3] sm:$0x1]
    %v228 = vmul.f32 %v25, %v25
    %v229 = vmul.f32 %v26, %v26
    %v230 = vmul.f32 %v27, %v27
    %v231 = vmul.f32 %v28, %v28
    %v232 = vmul.f32 %v29, %v29
    %v233 = vmul.f32 %v30, %v30
    %v234 = vmul.f32 %v31, %v31
    %v235 = vmul.f32 %v32, %v32
    %v236 = vmul.f32 %v33, %v33
    %v237 = vmul.f32 %v34, %v34
    %v238 = vmul.f32 %v35, %v35
    %v239 = vmul.f32 %v36, %v36
    %v240 = vmul.f32 %v37, %v37
    %v241 = vmul.f32 %v38, %v38
    %v242 = vmul.f32 %v39, %v39
    %v243 = vmul.f32 %v40, %v40
    %v244 = vmul.f32 %v41, %v41
    %v245 = vmul.f32 %v42, %v42
    %v246 = vmul.f32 %v43, %v43
    %v247 = vmul.f32 %v44, %v44
    %v248 = vmul.f32 %v45, %v45
    %v249 = vmul.f32 %v46, %v46
    %v250 = vmul.f32 %v47, %v47
    %v251 = vmul.f32 %v48, %v48
    %v252 = vmul.f32 %v49, %v49
    %v253 = vmul.f32 %v50, %v50
    %v254 = vmul.f32 %v51, %v51
    %v255 = vmul.f32 %v52, %v52
    %v256 = vmul.f32 %v53, %v53
    %v257 = vmul.f32 %v54, %v54
    %v258 = vmul.f32 %v55, %v55
    %v259 = vmul.f32 %v56, %v56
    %v260 = vmul.f32 %v57, %v57
    %v261 = vmul.f32 %v58, %v58
    %v262 = vmul.f32 %v59, %v59
    %v263 = vmul.f32 %v60, %v60
    %v264 = vmul.f32 %v61, %v61
    %v265 = vmul.f32 %v62, %v62
    %v266 = vmul.f32 %v63, %v63
    %v267 = vmul.f32 %v64, %v64
    %v268 = vmul.f32 %v65, %v65
    %v269 = vmul.f32 %v66, %v66
    %v270 = vmul.f32 %v67, %v67
    %v271 = vmul.f32 %v68, %v68
    %v272 = vmul.f32 %v69, %v69
    %v273 = vmul.f32 %v70, %v70
    %v274 = vmul.f32 %v71, %v71
    %v275 = vmul.f32 %v72, %v72
    %v276 = vmul.f32 %v73, %v73
    %v277 = vmul.f32 %v74, %v74
    %v278 = vmul.f32 %v75, %v75
    %v279 = vmul.f32 %v76, %v76
    %v280 = vmul.f32 %v77, %v77
    %v281 = vmul.f32 %v78, %v78
    %v282 = vmul.f32 %v79, %v79
    %v283 = vmul.f32 %v80, %v80
    %v284 = vmul.f32 %v81, %v81
    %v285 = vmul.f32 %v82, %v82
    %v286 = vmul.f32 %v83, %v83
    %v287 = vmul.f32 %v84, %v84
    %v288 = vmul.f32 %v85, %v85
    %v289 = vmul.f32 %v86, %v86
    %v290 = vmul.f32 %v87, %v87
    %v291 = vmul.f32 %v88, %v88
    %v292 = vsel %vm90, %v228, 0.0
    %v293 = vsel %vm90, %v229, 0.0
    %v294 = vadd.f32 %v292, %v293
    %v295 = vsel %vm90, %v230, 0.0
    %v296 = vadd.f32 %v294, %v295
    %v297 = vsel %vm90, %v231, 0.0
    %v298 = vadd.f32 %v296, %v297
    %v299 = vsel %vm90, %v232, 0.0
    %v300 = vadd.f32 %v298, %v299
    %v301 = vsel %vm90, %v233, 0.0
    %v302 = vadd.f32 %v300, %v301
    %v303 = vsel %vm90, %v234, 0.0
    %v304 = vadd.f32 %v302, %v303
    %v305 = vsel %vm90, %v235, 0.0
    %v306 = vadd.f32 %v304, %v305
    %v307 = vsel %vm90, %v236, 0.0
    %v308 = vadd.f32 %v306, %v307
    %v309 = vsel %vm90, %v237, 0.0
    %v310 = vadd.f32 %v308, %v309
    %v311 = vsel %vm90, %v238, 0.0
    %v312 = vadd.f32 %v310, %v311
    %v313 = vsel %vm90, %v239, 0.0
    %v314 = vadd.f32 %v312, %v313
    %v315 = vsel %vm90, %v240, 0.0
    %v316 = vadd.f32 %v314, %v315
    %v317 = vsel %vm90, %v241, 0.0
    %v318 = vadd.f32 %v316, %v317
    %v319 = vsel %vm90, %v242, 0.0
    %v320 = vadd.f32 %v318, %v319
    %v321 = vsel %vm90, %v243, 0.0
    %v322 = vadd.f32 %v320, %v321
    %v323 = vsel %vm90, %v244, 0.0
    %v324 = vadd.f32 %v322, %v323
    %v325 = vsel %vm90, %v245, 0.0
    %v326 = vadd.f32 %v324, %v325
    %v327 = vsel %vm90, %v246, 0.0
    %v328 = vadd.f32 %v326, %v327
    %v329 = vsel %vm90, %v247, 0.0
    %v330 = vadd.f32 %v328, %v329
    %v331 = vsel %vm90, %v248, 0.0
    %v332 = vadd.f32 %v330, %v331
    %v333 = vsel %vm90, %v249, 0.0
    %v334 = vadd.f32 %v332, %v333
    %v335 = vsel %vm90, %v250, 0.0
    %v336 = vadd.f32 %v334, %v335
    %v337 = vsel %vm90, %v251, 0.0
    %v338 = vadd.f32 %v336, %v337
    %v339 = vsel %vm90, %v252, 0.0
    %v340 = vadd.f32 %v338, %v339
    %v341 = vsel %vm90, %v253, 0.0
    %v342 = vadd.f32 %v340, %v341
    %v343 = vsel %vm90, %v254, 0.0
    %v344 = vadd.f32 %v342, %v343
    %v345 = vsel %vm90, %v255, 0.0
    %v346 = vadd.f32 %v344, %v345
    %v347 = vsel %vm90, %v256, 0.0
    %v348 = vadd.f32 %v346, %v347
    %v349 = vsel %vm90, %v257, 0.0
    %v350 = vadd.f32 %v348, %v349
    %v351 = vsel %vm90, %v258, 0.0
    %v352 = vadd.f32 %v350, %v351
    %v353 = vsel %vm90, %v259, 0.0
    %v354 = vadd.f32 %v352, %v353
    %v355 = vsel %vm90, %v260, 0.0
    %v356 = vadd.f32 %v354, %v355
    %v357 = vsel %vm90, %v261, 0.0
    %v358 = vadd.f32 %v356, %v357
    %v359 = vsel %vm90, %v262, 0.0
    %v360 = vadd.f32 %v358, %v359
    %v361 = vsel %vm90, %v263, 0.0
    %v362 = vadd.f32 %v360, %v361
    %v363 = vsel %vm90, %v264, 0.0
    %v364 = vadd.f32 %v362, %v363
    %v365 = vsel %vm90, %v265, 0.0
    %v366 = vadd.f32 %v364, %v365
    %v367 = vsel %vm90, %v266, 0.0
    %v368 = vadd.f32 %v366, %v367
    %v369 = vsel %vm90, %v267, 0.0
    %v370 = vadd.f32 %v368, %v369
    %v371 = vsel %vm90, %v268, 0.0
    %v372 = vadd.f32 %v370, %v371
    %v373 = vsel %vm90, %v269, 0.0
    %v374 = vadd.f32 %v372, %v373
    %v375 = vsel %vm90, %v270, 0.0
    %v376 = vadd.f32 %v374, %v375
    %v377 = vsel %vm90, %v271, 0.0
    %v378 = vadd.f32 %v376, %v377
    %v379 = vsel %vm90, %v272, 0.0
    %v380 = vadd.f32 %v378, %v379
    %v381 = vsel %vm90, %v273, 0.0
    %v382 = vadd.f32 %v380, %v381
    %v383 = vsel %vm90, %v274, 0.0
    %v384 = vadd.f32 %v382, %v383
    %v385 = vsel %vm90, %v275, 0.0
    %v386 = vadd.f32 %v384, %v385
    %v387 = vsel %vm90, %v276, 0.0
    %v388 = vadd.f32 %v386, %v387
    %v389 = vsel %vm90, %v277, 0.0
    %v390 = vadd.f32 %v388, %v389
    %v391 = vsel %vm90, %v278, 0.0
    %v392 = vadd.f32 %v390, %v391
    %v393 = vsel %vm90, %v279, 0.0
    %v394 = vadd.f32 %v392, %v393
    %v395 = vsel %vm90, %v280, 0.0
    %v396 = vadd.f32 %v394, %v395
    %v397 = vsel %vm90, %v281, 0.0
    %v398 = vadd.f32 %v396, %v397
    %v399 = vsel %vm90, %v282, 0.0
    %v400 = vadd.f32 %v398, %v399
    %v401 = vsel %vm90, %v283, 0.0
    %v402 = vadd.f32 %v400, %v401
    %v403 = vsel %vm90, %v284, 0.0
    %v404 = vadd.f32 %v402, %v403
    %v405 = vsel %vm90, %v285, 0.0
    %v406 = vadd.f32 %v404, %v405
    %v407 = vsel %vm90, %v286, 0.0
    %v408 = vadd.f32 %v406, %v407
    %v409 = vsel %vm90, %v287, 0.0
    %v410 = vadd.f32 %v408, %v409
    %v411 = vsel %vm90, %v288, 0.0
    %v412 = vadd.f32 %v410, %v411
    %v413 = vsel %vm90, %v289, 0.0
    %v414 = vadd.f32 %v412, %v413
    %v415 = vsel %vm90, %v290, 0.0
    %v416 = vadd.f32 %v414, %v415
    %v417 = vsel %vm90, %v291, 0.0
    %v418 = vadd.f32 %v416, %v417
    %v419 = vrot.slane %v418, 4
    %v420 = vadd.f32 %v418, %v419
    %v421 = vrot.slane %v420, 2
    %v422 = vadd.f32 %v420, %v421
    %v423 = vrot.slane %v422, 1
    %v424 = vadd.f32 %v422, %v423
    %v425 = vadd.f32 %v227, %v424
    %426 = vst.msk [vmem:[#allocation3] sm:$0x1] %vm225, %v425
    // Predicated region
    $region18: #{tpu_custom_call.1} parent=1 // pred_check
      %p427 = pneg %p18
    $region19: #{tpu_custom_call.1} parent=1 // pred_check_branch
      %429 = sbr.rel (%p427) target = $region21
    $region20: #{tpu_custom_call.1} parent=1 // pred_region
      %v430 = vld [vmem:[#allocation2] sm:$0x1]
      %v431 = vmul.f32 %v430, 0.001953125
      %v432 = vld [vmem:[#allocation3] sm:$0x1]
      %v433 = vmul.f32 %v432, 0.001953125
      %v434 = vmul.f32 %v431, %v431
      %v435 = vsub.f32 %v433, %v434
      %v436 = vld [vmem:[%s1] sm:$0x1]
      %v437 = vadd.f32 %v435, 1e-05
      %v438 = vrsqrt.pop %v437
      %v439 = vmul.f32 %v436, %v438
      %440 = vst.msk [vmem:[#allocation4] sm:$0x1] %vm225, %v439
      %v441 = vld [vmem:[%s2] sm:$0x1]
      %v442 = vmul.f32 %v431, %v439
      %v443 = vsub.f32 %v441, %v442
      %444 = vst.msk [vmem:[#allocation6] sm:$0x1] %vm225, %v443
    $region21: #{tpu_custom_call.1} parent=1 // pred_fallthru
      _
    // Predicated region
    $region22: #{tpu_custom_call.1} parent=1 // pred_check
      _
    $region23: #{tpu_custom_call.1} parent=1 // pred_check_branch
      %446 = sbr.rel (0) target = $region25
    $region24: #{tpu_custom_call.1} parent=1 // pred_region
      %s448 = ssub.s32 16, 16
      %449 = vsyncadd [#allocation5], %s448
      %s451 = sshll.u32 [#allocation4], 4
      %s452 = int_to_ptr.vmem [resolvable:$true] %s451
      %454 = dma.vmem_to_hbm [thread:$0]  %s452, 16, %s3, [#allocation5]
    $region25: #{tpu_custom_call.1} parent=1 // pred_fallthru
      _
    // Predicated region
    $region26: #{tpu_custom_call.1} parent=1 // pred_check
      _
    $region27: #{tpu_custom_call.1} parent=1 // pred_check_branch
      %456 = sbr.rel (0) target = $region29
    $region28: #{tpu_custom_call.1} parent=1 // pred_region
      %s458 = ssub.s32 16, 16
      %459 = vsyncadd [#allocation7], %s458
      %s461 = sshll.u32 [#allocation6], 4
      %s462 = int_to_ptr.vmem [resolvable:$true] %s461
      %464 = dma.vmem_to_hbm [thread:$0]  %s462, 16, %s4, [#allocation7]
    $region29: #{tpu_custom_call.1} parent=1 // pred_fallthru
      _
    // Predicated region
    $region30: #{tpu_custom_call.1} parent=1 // pred_check
      _
    $region31: #{tpu_custom_call.1} parent=1 // pred_check_branch
      %466 = sbr.rel (0) target = $region33
    $region32: #{tpu_custom_call.1} parent=1 // pred_region
      %467 = dma.done [#allocation5], 16
    $region33: #{tpu_custom_call.1} parent=1 // pred_fallthru
      _
    // Predicated region
    $region34: #{tpu_custom_call.1} parent=1 // pred_check
      _
    $region35: #{tpu_custom_call.1} parent=1 // pred_check_branch
      %469 = sbr.rel (0) target = $region37
    $region36: #{tpu_custom_call.1} parent=1 // pred_region
      %470 = dma.done [#allocation7], 16
    $region37: #{tpu_custom_call.1} parent=1 // pred_fallthru
      _
    %471 = vsyncpa [#allocation5], 1
    %472 = vsyncpa [#allocation7], 1

</llo_original>
